<compile_context>
chip_gen: v5e
topology: v5e:2x2
jax: 0.10.0
libtpu: 0.0.40
codegen_flags: <defaults>
</compile_context>

<pallas_src>
import jax
import jax.numpy as jnp
from jax.experimental import pallas as pl
from jax.experimental.pallas import tpu as pltpu

SMOOTH = 0.001
LANES = 128
SUBLANES = 8
MAX_TILE_ROWS = 8192   # 8192 * 128 * 4B = 4 MiB per f32 input block
NUM_SPLITS = 2         # v7x megacore split; harmless 2-step outer loop on 1-TC chips


def _sigmoid(x):
    # exp and approximate reciprocal both land in the otherwise-idle EUP slot.
    return pl.reciprocal(1.0 + jnp.exp(-x), approx=True)


def _dice_partial_kernel(meta_ref, pred_ref, true_ref, inter_ref, denom_ref):
    """Grid = (num_splits, tiles_per_core); axis 0 parallel, axis 1 sequential.

    meta_ref  : SMEM (2,) int32 — [last valid tile index, #valid elems in it].
    pred_ref  : VMEM (tile_rows, 128) native-dtype logits block.
    true_ref  : VMEM (tile_rows, 128) native-dtype target block.
    inter_ref : VMEM (8, 128) f32 per-core running sum(p * t)  (output block).
    denom_ref : VMEM (8, 128) f32 per-core running sum(p + t)  (output block).
    """
    c = pl.program_id(0)
    i = pl.program_id(1)
    t = c * pl.num_programs(1) + i          # global tile index (small ints, no overflow)
    last_tile = meta_ref[0]

    @pl.when(i == 0)
    def _init():
        inter_ref[...] = jnp.zeros_like(inter_ref)
        denom_ref[...] = jnp.zeros_like(denom_ref)

    def _accumulate(p, tr):
        # Fold (tile_rows, 128) -> (8, 128): groups of 8 rows are whole vregs,
        # so this is a pure VPU add tree (no cross-lane / XLU work).
        inter_ref[...] += jnp.sum((p * tr).reshape(-1, SUBLANES, LANES), axis=0)
        denom_ref[...] += jnp.sum((p + tr).reshape(-1, SUBLANES, LANES), axis=0)

    @pl.when(t < last_tile)
    def _fast():  # steady state: fully valid tile, no mask work
        p = _sigmoid(pred_ref[...].astype(jnp.float32))
        tr = true_ref[...].astype(jnp.float32)
        _accumulate(p, tr)

    @pl.when(t == last_tile)
    def _masked():  # only the last tile may contain pad / un-DMA'd overhang
        rem = meta_ref[1]
        shape = pred_ref.shape
        r = jax.lax.broadcasted_iota(jnp.int32, shape, 0)
        col = jax.lax.broadcasted_iota(jnp.int32, shape, 1)
        valid = (r * LANES + col) < rem
        p = jnp.where(valid, _sigmoid(pred_ref[...].astype(jnp.float32)), 0.0)
        tr = jnp.where(valid, true_ref[...].astype(jnp.float32), 0.0)
        _accumulate(p, tr)

    # t > last_tile (replicated / clamped block when the tile count is odd):
    # contributes nothing.


def dice_loss(y_pred: jax.Array, y_true: jax.Array, *,
              max_tile_rows: int = MAX_TILE_ROWS) -> jax.Array:
    """Pallas equivalent of: 1 - dice_score(y_pred, y_true, smooth=0.001)."""
    if y_true.dtype == jnp.bool_:
        y_true = y_true.astype(jnp.int8)   # bool refs are awkward; int8 streams fine

    pred_flat = jnp.ravel(y_pred)
    true_flat = jnp.ravel(y_true)
    n = int(pred_flat.shape[0])

    # Copy-free path when n is lane-aligned and at least one (8,128) tile;
    # otherwise minimal pad (the padded values are masked in-kernel anyway).
    min_elems = SUBLANES * LANES
    if n % LANES != 0 or n < min_elems:
        n_pad = max(((n + LANES - 1) // LANES) * LANES, min_elems)
        pred_flat = jnp.pad(pred_flat, (0, n_pad - n))
        true_flat = jnp.pad(true_flat, (0, n_pad - n))
    else:
        n_pad = n

    rows = n_pad // LANES                       # >= 8
    if rows >= 32:
        tile_rows = min(max_tile_rows, (rows // 32) * 32)   # 32-row granularity
    else:
        tile_rows = (rows // 8) * 8                         # tiny inputs
    num_tiles = (rows + tile_rows - 1) // tile_rows
    block_elems = tile_rows * LANES

    # Scalar-prefetched metadata for the (single) masked tile.
    last_tile = (n - 1) // block_elems
    rem_in_last = n - last_tile * block_elems
    meta = jnp.array([last_tile, rem_in_last], dtype=jnp.int32)

    num_splits = min(NUM_SPLITS, num_tiles)
    tiles_per_core = (num_tiles + num_splits - 1) // num_splits

    pred_2d = pred_flat.reshape(rows, LANES)
    true_2d = true_flat.reshape(rows, LANES)

    def in_map(c, i, meta_ref):
        t = c * tiles_per_core + i
        return (jnp.minimum(t, num_tiles - 1), 0)   # keep DMA block index in range

    def out_map(c, i, meta_ref):
        return (c, 0, 0)                            # per-core resident accumulator

    bytes_accessed = int(pred_2d.size * pred_2d.dtype.itemsize
                         + true_2d.size * true_2d.dtype.itemsize
                         + 2 * num_splits * SUBLANES * LANES * 4 + 8)
    cost = pl.CostEstimate(flops=8 * n, transcendentals=2 * n,
                           bytes_accessed=bytes_accessed)

    inter_part, denom_part = pl.pallas_call(
        _dice_partial_kernel,
        out_shape=(
            jax.ShapeDtypeStruct((num_splits, SUBLANES, LANES), jnp.float32),
            jax.ShapeDtypeStruct((num_splits, SUBLANES, LANES), jnp.float32),
        ),
        grid_spec=pltpu.PrefetchScalarGridSpec(
            num_scalar_prefetch=1,
            grid=(num_splits, tiles_per_core),
            in_specs=[
                pl.BlockSpec((tile_rows, LANES), in_map),
                pl.BlockSpec((tile_rows, LANES), in_map),
            ],
            out_specs=(
                pl.BlockSpec((None, SUBLANES, LANES), out_map),
                pl.BlockSpec((None, SUBLANES, LANES), out_map),
            ),
        ),
        compiler_params=pltpu.CompilerParams(
            dimension_semantics=("parallel", "arbitrary"),
            # ~16 MiB actually used at the largest f32 tile; leave headroom while
            # staying well under v7x's 64 MiB physical VMEM.
            vmem_limit_bytes=40 * 1024 * 1024,
        ),
        cost_estimate=cost,
    )(meta, pred_2d, true_2d)

    # Tiny finalize in the wrapper: cross-lane reduce + dice divide.
    inter = jnp.sum(inter_part)
    denom = jnp.sum(denom_part)
    dice = (2.0 * inter + SMOOTH) / (denom + SMOOTH)
    return 1.0 - dice


def _dice_loss_ref(y_pred, y_true, smooth=SMOOTH):
    p = jax.nn.sigmoid(y_pred.astype(jnp.float32)).ravel()
    t = y_true.astype(jnp.float32).ravel()
    inter = jnp.sum(p * t)
    dice = (2.0 * inter + smooth) / (jnp.sum(p) + jnp.sum(t) + smooth)
    return 1.0 - dice


if __name__ == "__main__":
    key = jax.random.PRNGKey(0)
    k1, k2, k3, k4, k5, k6 = jax.random.split(key, 6)

    # Tolerances account for the approximate EUP reciprocal used in the
    # in-kernel sigmoid (well below 5e-3 on a loss of O(0.5)).
    RTOL, ATOL = 5e-3, 5e-3

    # 1) NCHW-like f32 logits + binary f32 mask, lane-aligned size (copy-free path).
    y_pred = jax.random.normal(k1, (2, 4, 16, 16), dtype=jnp.float32)
    y_true = (jax.random.uniform(k2, (2, 4, 16, 16)) > 0.5).astype(jnp.float32)
    loss = jax.block_until_ready(dice_loss(y_pred, y_true))
    ref = jax.block_until_ready(_dice_loss_ref(y_pred, y_true))
    assert jnp.allclose(loss, ref, rtol=RTOL, atol=ATOL), (loss, ref)

    # 2) Ragged, non-128-aligned size with bf16 logits — exercises native-dtype
    #    streaming, the minimal pad, the two-way core split and the masked tail.
    y_pred2 = jax.random.normal(k3, (3, 5, 7, 11), dtype=jnp.bfloat16)
    y_true2 = (jax.random.uniform(k4, (3, 5, 7, 11)) > 0.5).astype(jnp.float32)
    loss2 = jax.block_until_ready(dice_loss(y_pred2, y_true2))
    ref2 = jax.block_until_ready(_dice_loss_ref(y_pred2, y_true2))
    assert jnp.allclose(loss2, ref2, rtol=RTOL, atol=ATOL), (loss2, ref2)

    # 3) Multi-tile sequential accumulation + odd tile count + bool (int8) target,
    #    with a reduced tile size so several grid steps run per core.
    y_pred3 = jax.random.normal(k5, (2, 4, 64, 80), dtype=jnp.float32)
    y_true3 = jax.random.uniform(k6, (2, 4, 64, 80)) > 0.5
    loss3 = jax.block_until_ready(dice_loss(y_pred3, y_true3, max_tile_rows=64))
    ref3 = jax.block_until_ready(_dice_loss_ref(y_pred3, y_true3))
    assert jnp.allclose(loss3, ref3, rtol=RTOL, atol=ATOL), (loss3, ref3)

    print("KERNEL_OK")
</pallas_src>

<mosaic_0001>
module attributes {stable_mosaic.version = 11 : i64} {
  func.func @_dice_partial_kernel(%arg0: i32, %arg1: i32, %arg2: memref<2xi32, #tpu.memory_space<smem>>, %arg3: memref<16x128xf32, #tpu.memory_space<vmem>>, %arg4: memref<16x128xf32, #tpu.memory_space<vmem>>, %arg5: memref<1x8x128xf32, #tpu.memory_space<vmem>>, %arg6: memref<1x8x128xf32, #tpu.memory_space<vmem>>) attributes {dimension_semantics = [#tpu.dimension_semantics<parallel>, #tpu.dimension_semantics<arbitrary>], iteration_bounds = array<i64: 1, 1>, scalar_prefetch = 1 : i64, scratch_operands = 0 : i64, tpu.core_type = #tpu.core_type<tc>, window_params = [{transform_indices = @transform_0, window_bounds = array<i64: 16, 128>}, {transform_indices = @transform_1, window_bounds = array<i64: 16, 128>}, {transform_indices = @transform_2, window_bounds = array<i64: 1, 8, 128>}, {transform_indices = @transform_3, window_bounds = array<i64: 1, 8, 128>}]} {
    %c1_i32 = arith.constant 1 : i32
    %0 = arith.muli %arg0, %c1_i32 : i32
    %1 = arith.addi %0, %arg1 : i32
    %c0 = arith.constant 0 : index
    %2 = memref.load %arg2[%c0] : memref<2xi32, #tpu.memory_space<smem>>
    %c0_i32 = arith.constant 0 : i32
    %3 = arith.cmpi eq, %arg1, %c0_i32 : i32
    %4 = arith.extui %3 : i1 to i32
    %c0_i32_0 = arith.constant 0 : i32
    %5 = arith.cmpi ne, %4, %c0_i32_0 : i32
    scf.if %5 {
      %cst = arith.constant 0.000000e+00 : f32
      %12 = vector.broadcast %cst : f32 to vector<8x128xf32>
      %c0_3 = arith.constant 0 : index
      %c0_4 = arith.constant 0 : index
      %c0_5 = arith.constant 0 : index
      %13 = vector.load %arg5[%c0_3, %c0_4, %c0_5] : memref<1x8x128xf32, #tpu.memory_space<vmem>>, vector<1x8x128xf32>
      %14 = vector.shape_cast %13 : vector<1x8x128xf32> to vector<8x128xf32>
      %15 = vector.shape_cast %12 : vector<8x128xf32> to vector<1x8x128xf32>
      tpu.vector_store %arg5[%c0_3, %c0_4, %c0_5], %15 {strides = array<i32>} : memref<1x8x128xf32, #tpu.memory_space<vmem>>, vector<1x8x128xf32>,
      %cst_6 = arith.constant 0.000000e+00 : f32
      %16 = vector.broadcast %cst_6 : f32 to vector<8x128xf32>
      %c0_7 = arith.constant 0 : index
      %c0_8 = arith.constant 0 : index
      %c0_9 = arith.constant 0 : index
      %17 = vector.load %arg6[%c0_7, %c0_8, %c0_9] : memref<1x8x128xf32, #tpu.memory_space<vmem>>, vector<1x8x128xf32>
      %18 = vector.shape_cast %17 : vector<1x8x128xf32> to vector<8x128xf32>
      %19 = vector.shape_cast %16 : vector<8x128xf32> to vector<1x8x128xf32>
      tpu.vector_store %arg6[%c0_7, %c0_8, %c0_9], %19 {strides = array<i32>} : memref<1x8x128xf32, #tpu.memory_space<vmem>>, vector<1x8x128xf32>,
    } else {
    }
    %6 = arith.cmpi slt, %1, %2 : i32
    %7 = arith.extui %6 : i1 to i32
    %c0_i32_1 = arith.constant 0 : i32
    %8 = arith.cmpi ne, %7, %c0_i32_1 : i32
    scf.if %8 {
      %c0_3 = arith.constant 0 : index
      %c0_4 = arith.constant 0 : index
      %12 = vector.load %arg3[%c0_3, %c0_4] : memref<16x128xf32, #tpu.memory_space<vmem>>, vector<16x128xf32>
      %cst = arith.constant 0.000000e+00 : f32
      %13 = vector.broadcast %cst : f32 to vector<16x128xf32>
      %14 = arith.subf %13, %12 : vector<16x128xf32>
      %15 = math.exp %14 : vector<16x128xf32>
      %cst_5 = arith.constant 1.000000e+00 : f32
      %16 = vector.broadcast %cst_5 : f32 to vector<16x128xf32>
      %17 = arith.addf %16, %15 : vector<16x128xf32>
      %18 = tpu.reciprocal %17 {approx = true} : vector<16x128xf32> -> vector<16x128xf32>
      %c0_6 = arith.constant 0 : index
      %c0_7 = arith.constant 0 : index
      %19 = vector.load %arg4[%c0_6, %c0_7] : memref<16x128xf32, #tpu.memory_space<vmem>>, vector<16x128xf32>
      %c0_8 = arith.constant 0 : index
      %c0_9 = arith.constant 0 : index
      %c0_10 = arith.constant 0 : index
      %20 = vector.load %arg5[%c0_8, %c0_9, %c0_10] : memref<1x8x128xf32, #tpu.memory_space<vmem>>, vector<1x8x128xf32>
      %21 = vector.shape_cast %20 : vector<1x8x128xf32> to vector<8x128xf32>
      %22 = arith.mulf %18, %19 : vector<16x128xf32>
      %23 = vector.shape_cast %22 : vector<16x128xf32> to vector<2x8x128xf32>
      %cst_11 = arith.constant dense<0.000000e+00> : vector<8x128xf32>
      %24 = vector.multi_reduction <add>, %23, %cst_11 [0] : vector<2x8x128xf32> to vector<8x128xf32>
      %25 = arith.addf %21, %24 : vector<8x128xf32>
      %c0_12 = arith.constant 0 : index
      %c0_13 = arith.constant 0 : index
      %c0_14 = arith.constant 0 : index
      %26 = vector.load %arg5[%c0_12, %c0_13, %c0_14] : memref<1x8x128xf32, #tpu.memory_space<vmem>>, vector<1x8x128xf32>
      %27 = vector.shape_cast %26 : vector<1x8x128xf32> to vector<8x128xf32>
      %28 = vector.shape_cast %25 : vector<8x128xf32> to vector<1x8x128xf32>
      tpu.vector_store %arg5[%c0_12, %c0_13, %c0_14], %28 {strides = array<i32>} : memref<1x8x128xf32, #tpu.memory_space<vmem>>, vector<1x8x128xf32>,
      %c0_15 = arith.constant 0 : index
      %c0_16 = arith.constant 0 : index
      %c0_17 = arith.constant 0 : index
      %29 = vector.load %arg6[%c0_15, %c0_16, %c0_17] : memref<1x8x128xf32, #tpu.memory_space<vmem>>, vector<1x8x128xf32>
      %30 = vector.shape_cast %29 : vector<1x8x128xf32> to vector<8x128xf32>
      %31 = arith.addf %18, %19 : vector<16x128xf32>
      %32 = vector.shape_cast %31 : vector<16x128xf32> to vector<2x8x128xf32>
      %cst_18 = arith.constant dense<0.000000e+00> : vector<8x128xf32>
      %33 = vector.multi_reduction <add>, %32, %cst_18 [0] : vector<2x8x128xf32> to vector<8x128xf32>
      %34 = arith.addf %30, %33 : vector<8x128xf32>
      %c0_19 = arith.constant 0 : index
      %c0_20 = arith.constant 0 : index
      %c0_21 = arith.constant 0 : index
      %35 = vector.load %arg6[%c0_19, %c0_20, %c0_21] : memref<1x8x128xf32, #tpu.memory_space<vmem>>, vector<1x8x128xf32>
      %36 = vector.shape_cast %35 : vector<1x8x128xf32> to vector<8x128xf32>
      %37 = vector.shape_cast %34 : vector<8x128xf32> to vector<1x8x128xf32>
      tpu.vector_store %arg6[%c0_19, %c0_20, %c0_21], %37 {strides = array<i32>} : memref<1x8x128xf32, #tpu.memory_space<vmem>>, vector<1x8x128xf32>,
    } else {
    }
    %9 = arith.cmpi eq, %1, %2 : i32
    %10 = arith.extui %9 : i1 to i32
    %c0_i32_2 = arith.constant 0 : i32
    %11 = arith.cmpi ne, %10, %c0_i32_2 : i32
    scf.if %11 {
      %c1 = arith.constant 1 : index
      %12 = memref.load %arg2[%c1] : memref<2xi32, #tpu.memory_space<smem>>
      %13 = tpu.iota {dimensions = array<i32: 0>} : vector<16x128xi32>
      %14 = tpu.iota {dimensions = array<i32: 1>} : vector<16x128xi32>
      %c128_i32 = arith.constant 128 : i32
      %15 = vector.broadcast %c128_i32 : i32 to vector<16x128xi32>
      %16 = arith.muli %13, %15 : vector<16x128xi32>
      %17 = arith.addi %16, %14 : vector<16x128xi32>
      %18 = vector.broadcast %12 : i32 to vector<16x128xi32>
      %19 = arith.cmpi slt, %17, %18 : vector<16x128xi32>
      %c0_3 = arith.constant 0 : index
      %c0_4 = arith.constant 0 : index
      %20 = vector.load %arg3[%c0_3, %c0_4] : memref<16x128xf32, #tpu.memory_space<vmem>>, vector<16x128xf32>
      %cst = arith.constant 0.000000e+00 : f32
      %21 = vector.broadcast %cst : f32 to vector<16x128xf32>
      %22 = arith.subf %21, %20 : vector<16x128xf32>
      %23 = math.exp %22 : vector<16x128xf32>
      %cst_5 = arith.constant 1.000000e+00 : f32
      %24 = vector.broadcast %cst_5 : f32 to vector<16x128xf32>
      %25 = arith.addf %24, %23 : vector<16x128xf32>
      %26 = tpu.reciprocal %25 {approx = true} : vector<16x128xf32> -> vector<16x128xf32>
      %cst_6 = arith.constant 0.000000e+00 : f32
      %27 = vector.broadcast %cst_6 : f32 to vector<16x128xf32>
      %28 = arith.select %19, %26, %27 : vector<16x128xi1>, vector<16x128xf32>
      %c0_7 = arith.constant 0 : index
      %c0_8 = arith.constant 0 : index
      %29 = vector.load %arg4[%c0_7, %c0_8] : memref<16x128xf32, #tpu.memory_space<vmem>>, vector<16x128xf32>
      %cst_9 = arith.constant 0.000000e+00 : f32
      %30 = vector.broadcast %cst_9 : f32 to vector<16x128xf32>
      %31 = arith.select %19, %29, %30 : vector<16x128xi1>, vector<16x128xf32>
      %c0_10 = arith.constant 0 : index
      %c0_11 = arith.constant 0 : index
      %c0_12 = arith.constant 0 : index
      %32 = vector.load %arg5[%c0_10, %c0_11, %c0_12] : memref<1x8x128xf32, #tpu.memory_space<vmem>>, vector<1x8x128xf32>
      %33 = vector.shape_cast %32 : vector<1x8x128xf32> to vector<8x128xf32>
      %34 = arith.mulf %28, %31 : vector<16x128xf32>
      %35 = vector.shape_cast %34 : vector<16x128xf32> to vector<2x8x128xf32>
      %cst_13 = arith.constant dense<0.000000e+00> : vector<8x128xf32>
      %36 = vector.multi_reduction <add>, %35, %cst_13 [0] : vector<2x8x128xf32> to vector<8x128xf32>
      %37 = arith.addf %33, %36 : vector<8x128xf32>
      %c0_14 = arith.constant 0 : index
      %c0_15 = arith.constant 0 : index
      %c0_16 = arith.constant 0 : index
      %38 = vector.load %arg5[%c0_14, %c0_15, %c0_16] : memref<1x8x128xf32, #tpu.memory_space<vmem>>, vector<1x8x128xf32>
      %39 = vector.shape_cast %38 : vector<1x8x128xf32> to vector<8x128xf32>
      %40 = vector.shape_cast %37 : vector<8x128xf32> to vector<1x8x128xf32>
      tpu.vector_store %arg5[%c0_14, %c0_15, %c0_16], %40 {strides = array<i32>} : memref<1x8x128xf32, #tpu.memory_space<vmem>>, vector<1x8x128xf32>,
      %c0_17 = arith.constant 0 : index
      %c0_18 = arith.constant 0 : index
      %c0_19 = arith.constant 0 : index
      %41 = vector.load %arg6[%c0_17, %c0_18, %c0_19] : memref<1x8x128xf32, #tpu.memory_space<vmem>>, vector<1x8x128xf32>
      %42 = vector.shape_cast %41 : vector<1x8x128xf32> to vector<8x128xf32>
      %43 = arith.addf %28, %31 : vector<16x128xf32>
      %44 = vector.shape_cast %43 : vector<16x128xf32> to vector<2x8x128xf32>
      %cst_20 = arith.constant dense<0.000000e+00> : vector<8x128xf32>
      %45 = vector.multi_reduction <add>, %44, %cst_20 [0] : vector<2x8x128xf32> to vector<8x128xf32>
      %46 = arith.addf %42, %45 : vector<8x128xf32>
      %c0_21 = arith.constant 0 : index
      %c0_22 = arith.constant 0 : index
      %c0_23 = arith.constant 0 : index
      %47 = vector.load %arg6[%c0_21, %c0_22, %c0_23] : memref<1x8x128xf32, #tpu.memory_space<vmem>>, vector<1x8x128xf32>
      %48 = vector.shape_cast %47 : vector<1x8x128xf32> to vector<8x128xf32>
      %49 = vector.shape_cast %46 : vector<8x128xf32> to vector<1x8x128xf32>
      tpu.vector_store %arg6[%c0_21, %c0_22, %c0_23], %49 {strides = array<i32>} : memref<1x8x128xf32, #tpu.memory_space<vmem>>, vector<1x8x128xf32>,
    } else {
    }
    return
  }
  func.func @transform_0(%arg0: i32, %arg1: i32, %arg2: memref<2xi32, #tpu.memory_space<smem>>) -> (i32, i32) {
    %c1_i32 = arith.constant 1 : i32
    %0 = arith.muli %arg0, %c1_i32 : i32
    %1 = arith.addi %0, %arg1 : i32
    %c0_i32 = arith.constant 0 : i32
    %2 = arith.minsi %1, %c0_i32 : i32
    %c0_i32_0 = arith.constant 0 : i32
    %c0_i32_1 = arith.constant 0 : i32
    return %2, %c0_i32_0 : i32, i32
  }
  func.func @transform_1(%arg0: i32, %arg1: i32, %arg2: memref<2xi32, #tpu.memory_space<smem>>) -> (i32, i32) {
    %c1_i32 = arith.constant 1 : i32
    %0 = arith.muli %arg0, %c1_i32 : i32
    %1 = arith.addi %0, %arg1 : i32
    %c0_i32 = arith.constant 0 : i32
    %2 = arith.minsi %1, %c0_i32 : i32
    %c0_i32_0 = arith.constant 0 : i32
    %c0_i32_1 = arith.constant 0 : i32
    return %2, %c0_i32_0 : i32, i32
  }
  func.func @transform_2(%arg0: i32, %arg1: i32, %arg2: memref<2xi32, #tpu.memory_space<smem>>) -> (i32, i32, i32) {
    %c0_i32 = arith.constant 0 : i32
    %c0_i32_0 = arith.constant 0 : i32
    %c0_i32_1 = arith.constant 0 : i32
    return %arg0, %c0_i32, %c0_i32_0 : i32, i32, i32
  }
  func.func @transform_3(%arg0: i32, %arg1: i32, %arg2: memref<2xi32, #tpu.memory_space<smem>>) -> (i32, i32, i32) {
    %c0_i32 = arith.constant 0 : i32
    %c0_i32_0 = arith.constant 0 : i32
    %c0_i32_1 = arith.constant 0 : i32
    return %arg0, %c0_i32, %c0_i32_0 : i32, i32, i32
  }
}

</mosaic_0001>

<llo_original>
// kernel: tpu_custom_call.1
$region0: #{tpu_custom_call.1}
  #allocation0 [shape = 'u32[]', space=smem, size = 0x4, offset = 0x4, fixed_abs, tag = 'smem constant byte address 0x4 - core index']
  #allocation1 [shape = 'u32[72,128]{1,0:T(1,128)}', space=vmem, size = 0x9000, scoped, tag = 'internal scratch']
  #allocation2 [shape = 's32[1]{0}', space=sflag, size = 0x4, scoped, tag = 'scoped memory for tpu_custom_call.1']
  #allocation3 [shape = 'u8[512]{0}', space=smem, size = 0x200, scoped, tag = 'prefetched SMEM operand 0']
  %s0 = inlined_call_operand.hbm [shape: s32[2], index: 0, kind: input, shape index: {}]
  %s1 = inlined_call_operand.hbm [shape: f32[16,128], index: 1, kind: input, shape index: {}]
  %s2 = inlined_call_operand.hbm [shape: f32[16,128], index: 2, kind: input, shape index: {}]
  %s3 = inlined_call_operand.hbm [shape: f32[1,8,128], index: 3, kind: output, shape index: {0}]
  %s4 = inlined_call_operand.hbm [shape: f32[1,8,128], index: 4, kind: output, shape index: {1}]
  %5 = xla_tuple %s3, %s4
  %s6 = sld [smem:[#allocation0]]
  $region46: #{tpu_custom_call.1} parent=0
    _
  %s8 = ssub.s32 1, %s6
  %s9 = scalar_select 0, %s8, %s6
  %s11 = sshll.u32 %s0, 4
  %s12 = int_to_ptr.hbm [resolvable:$true] %s11
  %14 = dma.hbm_to_smem %s12, 16, [#allocation3], [#allocation2]
  %16 = dma.done [#allocation2], 16
  %17 = sfence
  $region1: #{tpu_custom_call.1} parent=0
    #allocation4 [shape = 'u8[8192]{0}', space=vmem, size = 0x2000, scoped, tag = 'input window, operand 1, single buffered']
    #allocation5 [shape = 's32[1]{0}', space=sflag, size = 0x4, scoped, tag = 'scoped memory for tpu_custom_call.1']
    #allocation6 [shape = 's32[1]{0}', space=sflag, size = 0x4, scoped, tag = 'scoped memory for tpu_custom_call.1']
    #allocation7 [shape = 'u8[8192]{0}', space=vmem, size = 0x2000, scoped, tag = 'input window, operand 2, single buffered']
    #allocation8 [shape = 's32[1]{0}', space=sflag, size = 0x4, scoped, tag = 'scoped memory for tpu_custom_call.1']
    #allocation9 [shape = 'u8[4096]{0}', space=vmem, size = 0x1000, scoped, tag = 'output window, operand 0, single buffered']
    #allocation10 [shape = 'u8[4096]{0}', space=vmem, size = 0x1000, scoped, tag = 'output window, operand 1, single buffered']
    #allocation11 [shape = 's32[1]{0}', space=sflag, size = 0x4, scoped, tag = 'scoped memory for tpu_custom_call.1']
    %18 = vsyncpa [#allocation5], 0
    %19 = vsyncpa [#allocation8], 0
    %20 = vsyncpa [#allocation6], 0
    %21 = vsyncpa [#allocation11], 0
    // Predicated region
    $region2: #{tpu_custom_call.1} parent=1 // pred_check
      _
    $region3: #{tpu_custom_call.1} parent=1 // pred_check_branch
      %23 = sbr.rel (0) target = $region5
    $region4: #{tpu_custom_call.1} parent=1 // pred_region
      %s24 = sadd.s32 0, 0
      %p25 = scmp.lt.s32.totalorder %s24, 0
      %s26 = scalar_select %p25, %s24, 0
      %s27 = smul.u32 2, %s26
      %29 = vsyncadd [#allocation5], 0
      %s30 = smul.addr %s27, 8
      %s31 = scalar_lea.hbm %s1, %s30
      %s32 = sshll.u32 %s31, 4
      %s33 = int_to_ptr.hbm [resolvable:$true] %s32
      %s34 = sshll.u32 [#allocation4], 4
      %s35 = int_to_ptr.vmem [resolvable:$true] %s34
      %40 = dma.hbm_to_vmem [thread:$0]  %s33, 256, %s35, [#allocation5], 128, 128, 8
    $region5: #{tpu_custom_call.1} parent=1 // pred_fallthru
      _
    // Predicated region
    $region6: #{tpu_custom_call.1} parent=1 // pred_check
      _
    $region7: #{tpu_custom_call.1} parent=1 // pred_check_branch
      %42 = sbr.rel (0) target = $region9
    $region8: #{tpu_custom_call.1} parent=1 // pred_region
      %s43 = sadd.s32 0, 0
      %p44 = scmp.lt.s32.totalorder %s43, 0
      %s45 = scalar_select %p44, %s43, 0
      %s46 = smul.u32 2, %s45
      %48 = vsyncadd [#allocation8], 0
      %s49 = smul.addr %s46, 8
      %s50 = scalar_lea.hbm %s2, %s49
      %s51 = sshll.u32 %s50, 4
      %s52 = int_to_ptr.hbm [resolvable:$true] %s51
      %s53 = sshll.u32 [#allocation7], 4
      %s54 = int_to_ptr.vmem [resolvable:$true] %s53
      %59 = dma.hbm_to_vmem [thread:$0]  %s52, 256, %s54, [#allocation8], 128, 128, 8
    $region9: #{tpu_custom_call.1} parent=1 // pred_fallthru
      _
    // Predicated region
    $region10: #{tpu_custom_call.1} parent=1 // pred_check
      _
    $region11: #{tpu_custom_call.1} parent=1 // pred_check_branch
      %61 = sbr.rel (0) target = $region13
    $region12: #{tpu_custom_call.1} parent=1 // pred_region
      %63 = dma.done [#allocation5], 256
    $region13: #{tpu_custom_call.1} parent=1 // pred_fallthru
      _
    // Predicated region
    $region14: #{tpu_custom_call.1} parent=1 // pred_check
      _
    $region15: #{tpu_custom_call.1} parent=1 // pred_check_branch
      %65 = sbr.rel (0) target = $region17
    $region16: #{tpu_custom_call.1} parent=1 // pred_region
      %67 = dma.done [#allocation8], 256
    $region17: #{tpu_custom_call.1} parent=1 // pred_fallthru
      _
    %s68 = sadd.s32 0, 0
    %p69 = scmp.lt.s32.totalorder %s68, 0
    %s70 = scalar_select %p69, %s68, 0
    %s71 = smul.u32 2, %s70
    %s72 = sadd.s32 0, 0
    %p73 = scmp.lt.s32.totalorder %s72, 0
    %s74 = scalar_select %p73, %s72, 0
    %s75 = smul.u32 2, %s74
    %s76 = sadd.s32 0, 0
    %s77 = sld [smem:[#allocation3]]
    %p78 = scmp.eq.s32.totalorder 0, 0
    // Predicated region
    $region18: #{tpu_custom_call.1} parent=1 // pred_check
      %p79 = pneg %p78
    $region19: #{tpu_custom_call.1} parent=1 // pred_check_branch
      %81 = sbr.rel (%p79) target = $region21
    $region20: #{tpu_custom_call.1} parent=1 // pred_region
      %82 = vst [vmem:[#allocation9] sm:$0xff] 0.0
      %83 = vst [vmem:[#allocation10] sm:$0xff] 0.0
    $region21: #{tpu_custom_call.1} parent=1 // pred_fallthru
      _
    %p84 = scmp.lt.s32.totalorder %s76, %s77
    // Predicated region
    $region22: #{tpu_custom_call.1} parent=1 // pred_check
      %p85 = pneg %p84
    $region23: #{tpu_custom_call.1} parent=1 // pred_check_branch
      %87 = sbr.rel (%p85) target = $region25
    $region24: #{tpu_custom_call.1} parent=1 // pred_region
      %v88 = vld [vmem:[#allocation4] sm:$0xff]
      %v89 = vld [vmem:[#allocation4 + $0x8] sm:$0xff]
      %v90 = vsub.f32 0.0, %v88
      %v91 = vsub.f32 0.0, %v89
      %v92 = vmul.f32 %v90, 1.442695
      %v93 = vpow.pop %v92
      %v94 = vmul.f32 %v91, 1.442695
      %v95 = vpow.pop %v94
      %v96 = vadd.f32 %v93, 1.0
      %v97 = vadd.f32 %v95, 1.0
      %v98 = vrcp.pop %v96
      %v99 = vrcp.pop %v97
      %v100 = vld [vmem:[#allocation7] sm:$0xff]
      %v101 = vld [vmem:[#allocation7 + $0x8] sm:$0xff]
      %v102 = vld [vmem:[#allocation9] sm:$0xff]
      %v103 = vmul.f32 %v98, %v100
      %v104 = vmul.f32 %v99, %v101
      %v105 = vadd.f32 %v103, %v104
      %v106 = vadd.f32 %v102, %v105
      %107 = vst [vmem:[#allocation9] sm:$0xff] %v106
      %v108 = vld [vmem:[#allocation10] sm:$0xff]
      %v109 = vadd.f32 %v98, %v100
      %v110 = vadd.f32 %v99, %v101
      %v111 = vadd.f32 %v109, %v110
      %v112 = vadd.f32 %v108, %v111
      %113 = vst [vmem:[#allocation10] sm:$0xff] %v112
    $region25: #{tpu_custom_call.1} parent=1 // pred_fallthru
      _
    %p114 = scmp.eq.s32.totalorder %s76, %s77
    // Predicated region
    $region26: #{tpu_custom_call.1} parent=1 // pred_check
      %p115 = pneg %p114
    $region27: #{tpu_custom_call.1} parent=1 // pred_check_branch
      %117 = sbr.rel (%p115) target = $region29
    $region28: #{tpu_custom_call.1} parent=1 // pred_region
      %s118 = sld [smem:[#allocation3 + $0x1]]
      %v119 = vlaneseq
      %v120 = vshrl.u32 %v119, 7
      %v121 = vadd.s32 %v120, 8
      %v122 = vlaneseq
      %v123 = vand.u32 %v122, 127
      %v124 = vmul.u32 %v120, 128
      %v125 = vmul.u32 %v121, 128
      %v126 = vadd.s32 %v124, %v123
      %v127 = vadd.s32 %v125, %v123
      %v128 = vstv %s118
      %vm129 = vcmp.lt.s32.totalorder %v126, %v128
      %vm130 = vcmp.lt.s32.totalorder %v127, %v128
      %v131 = vld [vmem:[#allocation4] sm:$0xff]
      %v132 = vld [vmem:[#allocation4 + $0x8] sm:$0xff]
      %v133 = vsub.f32 0.0, %v131
      %v134 = vsub.f32 0.0, %v132
      %v135 = vmul.f32 %v133, 1.442695
      %v136 = vpow.pop %v135
      %v137 = vmul.f32 %v134, 1.442695
      %v138 = vpow.pop %v137
      %v139 = vadd.f32 %v136, 1.0
      %v140 = vadd.f32 %v138, 1.0
      %v141 = vrcp.pop %v139
      %v142 = vrcp.pop %v140
      %v143 = vsel %vm129, %v141, 0.0
      %v144 = vsel %vm130, %v142, 0.0
      %v145 = vld [vmem:[#allocation7] sm:$0xff]
      %v146 = vld [vmem:[#allocation7 + $0x8] sm:$0xff]
      %v147 = vsel %vm129, %v145, 0.0
      %v148 = vsel %vm130, %v146, 0.0
      %v149 = vld [vmem:[#allocation9] sm:$0xff]
      %v150 = vmul.f32 %v143, %v147
      %v151 = vmul.f32 %v144, %v148
      %v152 = vadd.f32 %v150, %v151
      %v153 = vadd.f32 %v149, %v152
      %154 = vst [vmem:[#allocation9] sm:$0xff] %v153
      %v155 = vld [vmem:[#allocation10] sm:$0xff]
      %v156 = vadd.f32 %v143, %v147
      %v157 = vadd.f32 %v144, %v148
      %v158 = vadd.f32 %v156, %v157
      %v159 = vadd.f32 %v155, %v158
      %160 = vst [vmem:[#allocation10] sm:$0xff] %v159
    $region29: #{tpu_custom_call.1} parent=1 // pred_fallthru
      _
    // Predicated region
    $region30: #{tpu_custom_call.1} parent=1 // pred_check
      _
    $region31: #{tpu_custom_call.1} parent=1 // pred_check_branch
      %162 = sbr.rel (0) target = $region33
    $region32: #{tpu_custom_call.1} parent=1 // pred_region
      %164 = vsyncadd [#allocation6], 0
      %s166 = sshll.u32 [#allocation9], 4
      %s167 = int_to_ptr.vmem [resolvable:$true] %s166
      %s168 = sshll.u32 %s3, 4
      %s169 = int_to_ptr.hbm [resolvable:$true] %s168
      %171 = dma.vmem_to_hbm [thread:$0]  %s167, 128, %s169, [#allocation6]
    $region33: #{tpu_custom_call.1} parent=1 // pred_fallthru
      _
    // Predicated region
    $region34: #{tpu_custom_call.1} parent=1 // pred_check
      _
    $region35: #{tpu_custom_call.1} parent=1 // pred_check_branch
      %173 = sbr.rel (0) target = $region37
    $region36: #{tpu_custom_call.1} parent=1 // pred_region
      %175 = vsyncadd [#allocation11], 0
      %s177 = sshll.u32 [#allocation10], 4
      %s178 = int_to_ptr.vmem [resolvable:$true] %s177
      %s179 = sshll.u32 %s4, 4
      %s180 = int_to_ptr.hbm [resolvable:$true] %s179
      %182 = dma.vmem_to_hbm [thread:$0]  %s178, 128, %s180, [#allocation11]
    $region37: #{tpu_custom_call.1} parent=1 // pred_fallthru
      _
    // Predicated region
    $region38: #{tpu_custom_call.1} parent=1 // pred_check
      _
    $region39: #{tpu_custom_call.1} parent=1 // pred_check_branch
      %184 = sbr.rel (0) target = $region41
    $region40: #{tpu_custom_call.1} parent=1 // pred_region
      %186 = dma.done [#allocation6], 128
    $region41: #{tpu_custom_call.1} parent=1 // pred_fallthru
      _
    // Predicated region
    $region42: #{tpu_custom_call.1} parent=1 // pred_check
      _
    $region43: #{tpu_custom_call.1} parent=1 // pred_check_branch
      %188 = sbr.rel (0) target = $region45
    $region44: #{tpu_custom_call.1} parent=1 // pred_region
      %190 = dma.done [#allocation11], 128
    $region45: #{tpu_custom_call.1} parent=1 // pred_fallthru
      _
    %191 = vsyncpa [#allocation5], 1
    %192 = vsyncpa [#allocation8], 1
    %193 = vsyncpa [#allocation6], 1
    %194 = vsyncpa [#allocation11], 1

</llo_original>
